<compile_context>
chip_gen: v5e
topology: v5e:2x2
jax: 0.10.0
libtpu: 0.0.40
codegen_flags: <defaults>
</compile_context>

<pallas_src>
from typing import Any, NamedTuple, Tuple

import jax
import jax.numpy as jnp
from jax import lax
from jax.experimental import pallas as pl
from jax.experimental.pallas import tpu as pltpu

_LANE = 128      # vreg lane width (last dim)
_SUBLANE = 8     # f32 sublane count (second-to-last dim)


def _round_up(x, m):
    return ((x + m - 1) // m) * m


def _choose_tm(b8, tm_max=1024):
    """Batch-tile rows. Per-grid-step overhead (~0.35us) dominates tiny tiles,
    so go big; above one tile's worth split into an EVEN number of balanced
    tiles (two v7x TensorCores), each <= tm_max rows."""
    if b8 <= 512:
        return b8                              # one tile, grid=(1,)
    n_tiles = 2 * pl.cdiv(b8, 2 * tm_max)      # even count, tiles <= tm_max
    return _round_up(pl.cdiv(b8, n_tiles), _SUBLANE)


class LinModPrepared(NamedTuple):
    sizes: Tuple[int, ...]       # logical feature sizes [d0, d1, ..., dL]
    sizes_pad: Tuple[int, ...]   # lane-padded feature sizes
    flat: Tuple[Any, ...]        # (w0_p, b0_p, w1_p, b1_p, ...) padded arrays
    compute_dtype: Any


def prepare_lin_mod(params, d_in, compute_dtype=jnp.bfloat16):
    """Pad/cast the weights ONCE (outside the per-call hot path).

    compute_dtype: jnp.bfloat16 (MXU-native fast path, f32 accumulate) or
    jnp.float32 (strict parity). Biases stay f32 (added post-accumulation).
    """
    sizes = [int(d_in)] + [int(w.shape[1]) for (w, _) in params]
    sizes_pad = [_round_up(s, _LANE) for s in sizes]
    flat = []
    for i, (w, b) in enumerate(params):
        w_p = jnp.pad(
            w, ((0, sizes_pad[i] - sizes[i]), (0, sizes_pad[i + 1] - sizes[i + 1]))
        ).astype(compute_dtype)
        b_p = jnp.pad(b, (0, sizes_pad[i + 1] - sizes[i + 1]))
        b_p = b_p.reshape(1, sizes_pad[i + 1]).astype(jnp.float32)
        flat += [w_p, b_p]
    return LinModPrepared(tuple(sizes), tuple(sizes_pad), tuple(flat), compute_dtype)


def _make_mlp_kernel(n_layers, sftmx, final_valid, compute_dtype):
    """Fused MLP body: chain of (dot + bias + ReLU), optional masked softmax."""

    def kernel(x_ref, *refs):
        wb_refs = refs[: 2 * n_layers]
        o_ref = refs[2 * n_layers]

        # In-kernel cast (free VPU op under the matmul) instead of a separate
        # wrapper-side XLA pass over HBM.
        h = x_ref[...].astype(compute_dtype)                 # (tm, D0_pad)
        for i in range(n_layers):
            w = wb_refs[2 * i][...]                          # (Din_pad, Dout_pad)
            b = wb_refs[2 * i + 1][...]                      # (1, Dout_pad) f32
            # MXU matmul with f32 accumulation; bias/activation math stays f32.
            y = jnp.dot(h, w, preferred_element_type=jnp.float32) + b
            last = i == n_layers - 1
            if last and sftmx:
                if final_valid < y.shape[-1]:
                    # mask zero-padded output lanes so they don't pollute softmax
                    col = lax.broadcasted_iota(jnp.int32, y.shape, 1)
                    y = jnp.where(col < final_valid, y, -jnp.inf)
                m = jnp.max(y, axis=-1, keepdims=True)
                e = jnp.exp(y - m)
                denom = jnp.sum(e, axis=-1, keepdims=True)
                # Exact normalization (divide on the (tm,1) column only). The
                # previous approx vrcp (~2.4e-4 rel err) failed strict parity.
                y = e * (1.0 / denom)
            else:
                y = jnp.maximum(y, 0.0)
            h = y if last else y.astype(compute_dtype)
        o_ref[...] = h.astype(o_ref.dtype)

    return kernel


def lin_mod_forward(x, prep: LinModPrepared, sftmx=False, *, tm=None):
    """Forward pass of lin_Mod: Linear+ReLU per layer, Softmax(dim=-1) on the
    final layer iff sftmx=True (otherwise ReLU), fused into one Pallas kernel.
    `prep` comes from prepare_lin_mod() (weights padded/cast once)."""
    B, d0 = x.shape
    sizes, sizes_pad = prep.sizes, prep.sizes_pad
    assert d0 == sizes[0], f"expected {sizes[0]} input features, got {d0}"
    n_layers = len(sizes) - 1
    compute_dtype = prep.compute_dtype

    B8 = _round_up(B, _SUBLANE)
    if tm is None:
        tm = _choose_tm(B8)
    B_pad = _round_up(B8, tm)
    n_tiles = B_pad // tm

    # Single fused pad (feature dim -> lane multiple, batch -> tile multiple,
    # at most tm-1 / usually <8 garbage rows with the even-split heuristic).
    # x keeps its native dtype; the compute_dtype cast happens in-kernel.
    # TODO(synk): handle the ragged last batch tile fully in-kernel (masked
    # partial tile) to drop this pad copy altogether for very large B.
    x_p = jnp.pad(x, ((0, B_pad - B), (0, sizes_pad[0] - sizes[0])))

    # All weights/biases resident in VMEM. Constant index_map -> DMA'd once;
    # Buffered(1) disables the default double-buffer and halves their VMEM.
    in_specs = [pl.BlockSpec((tm, sizes_pad[0]), lambda i: (i, 0))]
    for li in range(n_layers):
        din, dout = sizes_pad[li], sizes_pad[li + 1]
        in_specs.append(pl.BlockSpec((din, dout), lambda i: (0, 0),
                                     pipeline_mode=pl.Buffered(1)))
        in_specs.append(pl.BlockSpec((1, dout), lambda i: (0, 0),
                                     pipeline_mode=pl.Buffered(1)))
    out_specs = pl.BlockSpec((tm, sizes_pad[-1]), lambda i: (i, 0))

    # Scoped-VMEM budget: single-buffered weights + double-buffered x/out tiles
    # + live-activation headroom, x1.5 slack, capped at v7x's 64 MiB physical.
    c_itemsize = jnp.dtype(compute_dtype).itemsize
    io_itemsize = jnp.dtype(x.dtype).itemsize
    w_bytes = sum(sizes_pad[i] * sizes_pad[i + 1] * c_itemsize + sizes_pad[i + 1] * 4
                  for i in range(n_layers))
    io_bytes = 2 * tm * (sizes_pad[0] + sizes_pad[-1]) * io_itemsize
    act_bytes = 3 * tm * max(sizes_pad) * 4
    vmem_limit = min(64 * 2**20,
                     max(int(1.5 * (w_bytes + io_bytes + act_bytes)), 16 * 2**20))
    # TODO(synk): once w_bytes exceeds ~20-25 MiB (v7x VMEM is 64 MiB/TC, 128 on
    # v5e/v6e) switch to a layer/K-tiled grid axis ("arbitrary") with an
    # accumulator scratch and a two-pass softmax instead of resident weights.

    flops = 2 * B_pad * sum(sizes_pad[i] * sizes_pad[i + 1] for i in range(n_layers))
    transcendentals = B_pad * sizes_pad[-1] if sftmx else 0
    out_bytes = B_pad * sizes_pad[-1] * io_itemsize
    in_bytes = x_p.size * x_p.dtype.itemsize + sum(
        int(a.size) * a.dtype.itemsize for a in prep.flat)
    cost = pl.CostEstimate(flops=int(flops),
                           transcendentals=int(transcendentals),
                           bytes_accessed=int(in_bytes + out_bytes))

    kernel = _make_mlp_kernel(n_layers, sftmx, sizes[-1], compute_dtype)
    out = pl.pallas_call(
        kernel,
        out_shape=jax.ShapeDtypeStruct((B_pad, sizes_pad[-1]), x.dtype),
        grid_spec=pltpu.PrefetchScalarGridSpec(
            num_scalar_prefetch=0,
            grid=(n_tiles,),
            in_specs=in_specs,
            out_specs=out_specs,
        ),
        compiler_params=pltpu.CompilerParams(
            dimension_semantics=("parallel",),
            vmem_limit_bytes=vmem_limit,
        ),
        cost_estimate=cost,
    )(x_p, *prep.flat)
    return out[:B, : sizes[-1]]


def init_lin_mod_params(sizes, key):
    """Deterministic init matching nn.Linear shapes: W (in, out), b (out,)."""
    params = []
    for i in range(len(sizes) - 1):
        fan_in, fan_out = sizes[i], sizes[i + 1]
        key, kw, kb = jax.random.split(key, 3)
        bound = 1.0 / jnp.sqrt(fan_in)
        w = jax.random.uniform(kw, (fan_in, fan_out), jnp.float32, -bound, bound)
        b = jax.random.uniform(kb, (fan_out,), jnp.float32, -bound, bound)
        params.append((w, b))
    return params


def _reference_forward(x, params, sftmx=False):
    n_layers = len(params)
    h = x
    for i, (w, b) in enumerate(params):
        h = h @ w + b
        if i == n_layers - 1 and sftmx:
            h = jax.nn.softmax(h, axis=-1)
        else:
            h = jnp.maximum(h, 0.0)
    return h


if __name__ == "__main__":
    key = jax.random.PRNGKey(0)
    sizes = [32, 64, 16]          # lin_Mod(sizes=[32, 64, 16], sftmx=True)
    key, kx, kp, kx2 = jax.random.split(key, 4)
    params = init_lin_mod_params(sizes, kp)

    # --- strict-parity f32 path, small batch, softmax head (single tile) ---
    prep_f32 = prepare_lin_mod(params, sizes[0], compute_dtype=jnp.float32)
    x = jax.random.normal(kx, (8, sizes[0]), jnp.float32)
    out_sm = jax.block_until_ready(lin_mod_forward(x, prep_f32, sftmx=True))
    ref_sm = _reference_forward(x, params, sftmx=True)
    assert out_sm.shape == (8, sizes[-1])
    # tolerance covers MXU f32 pass-decomposition differences vs the XLA dot
    assert jnp.allclose(out_sm, ref_sm, atol=2e-3, rtol=2e-3)

    # --- default bf16 MXU path, larger ragged batch (304-row tile), ReLU head ---
    prep_bf16 = prepare_lin_mod(params, sizes[0])       # default: bf16 compute
    x2 = jax.random.normal(kx2, (300, sizes[0]), jnp.float32)
    out_relu = jax.block_until_ready(lin_mod_forward(x2, prep_bf16, sftmx=False))
    ref_relu = _reference_forward(x2, params, sftmx=False)
    assert out_relu.shape == (300, sizes[-1])
    assert jnp.allclose(out_relu, ref_relu, atol=5e-2, rtol=5e-2)

    # --- bf16 path with softmax head ---
    out_bf = jax.block_until_ready(lin_mod_forward(x2, prep_bf16, sftmx=True))
    ref_bf = _reference_forward(x2, params, sftmx=True)
    assert jnp.allclose(out_bf, ref_bf, atol=5e-2, rtol=5e-2)

    print("KERNEL_OK")
</pallas_src>

<mosaic_0001>
module attributes {stable_mosaic.version = 11 : i64} {
  func.func @kernel(%arg0: i32, %arg1: memref<8x128xf32, #tpu.memory_space<vmem>>, %arg2: memref<128x128xf32, #tpu.memory_space<vmem>>, %arg3: memref<1x128xf32, #tpu.memory_space<vmem>>, %arg4: memref<128x128xf32, #tpu.memory_space<vmem>>, %arg5: memref<1x128xf32, #tpu.memory_space<vmem>>, %arg6: memref<8x128xf32, #tpu.memory_space<vmem>>) attributes {dimension_semantics = [#tpu.dimension_semantics<parallel>], iteration_bounds = array<i64: 1>, scalar_prefetch = 0 : i64, scratch_operands = 0 : i64, tpu.core_type = #tpu.core_type<tc>, window_params = [{transform_indices = @transform_0, window_bounds = array<i64: 8, 128>}, {pipeline_mode = #tpu.pipeline_mode<synchronous>, transform_indices = @transform_1, window_bounds = array<i64: 128, 128>}, {pipeline_mode = #tpu.pipeline_mode<synchronous>, transform_indices = @transform_2, window_bounds = array<i64: 1, 128>}, {pipeline_mode = #tpu.pipeline_mode<synchronous>, transform_indices = @transform_3, window_bounds = array<i64: 128, 128>}, {pipeline_mode = #tpu.pipeline_mode<synchronous>, transform_indices = @transform_4, window_bounds = array<i64: 1, 128>}, {transform_indices = @transform_5, window_bounds = array<i64: 8, 128>}]} {
    %c0 = arith.constant 0 : index
    %c0_0 = arith.constant 0 : index
    %0 = vector.load %arg1[%c0, %c0_0] : memref<8x128xf32, #tpu.memory_space<vmem>>, vector<8x128xf32>
    %c0_1 = arith.constant 0 : index
    %c0_2 = arith.constant 0 : index
    %1 = vector.load %arg2[%c0_1, %c0_2] : memref<128x128xf32, #tpu.memory_space<vmem>>, vector<128x128xf32>
    %c0_3 = arith.constant 0 : index
    %c0_4 = arith.constant 0 : index
    %2 = vector.load %arg3[%c0_3, %c0_4] : memref<1x128xf32, #tpu.memory_space<vmem>>, vector<1x128xf32>
    %cst = arith.constant dense<0.000000e+00> : vector<8x128xf32>
    %3 = tpu.matmul %0, %1, %cst {dimension_numbers = #tpu.dot_dimension_numbers<[1], [0], [0], [1], [0, 0, 1, 1], [], []>} : vector<8x128xf32>, vector<128x128xf32>, vector<8x128xf32> -> vector<8x128xf32>
    %4 = vector.broadcast %2 : vector<1x128xf32> to vector<8x128xf32>
    %5 = arith.addf %3, %4 : vector<8x128xf32>
    %cst_5 = arith.constant 0.000000e+00 : f32
    %6 = vector.broadcast %cst_5 : f32 to vector<8x128xf32>
    %7 = arith.maximumf %5, %6 : vector<8x128xf32>
    %c0_6 = arith.constant 0 : index
    %c0_7 = arith.constant 0 : index
    %8 = vector.load %arg4[%c0_6, %c0_7] : memref<128x128xf32, #tpu.memory_space<vmem>>, vector<128x128xf32>
    %c0_8 = arith.constant 0 : index
    %c0_9 = arith.constant 0 : index
    %9 = vector.load %arg5[%c0_8, %c0_9] : memref<1x128xf32, #tpu.memory_space<vmem>>, vector<1x128xf32>
    %cst_10 = arith.constant dense<0.000000e+00> : vector<8x128xf32>
    %10 = tpu.matmul %7, %8, %cst_10 {dimension_numbers = #tpu.dot_dimension_numbers<[1], [0], [0], [1], [0, 0, 1, 1], [], []>} : vector<8x128xf32>, vector<128x128xf32>, vector<8x128xf32> -> vector<8x128xf32>
    %11 = vector.broadcast %9 : vector<1x128xf32> to vector<8x128xf32>
    %12 = arith.addf %10, %11 : vector<8x128xf32>
    %13 = tpu.iota {dimensions = array<i32: 1>} : vector<8x128xi32>
    %c16_i32 = arith.constant 16 : i32
    %14 = vector.broadcast %c16_i32 : i32 to vector<8x128xi32>
    %15 = arith.cmpi slt, %13, %14 : vector<8x128xi32>
    %cst_11 = arith.constant 0xFF800000 : f32
    %16 = vector.broadcast %cst_11 : f32 to vector<8x128xf32>
    %17 = arith.select %15, %12, %16 : vector<8x128xi1>, vector<8x128xf32>
    %cst_12 = arith.constant dense<0xFF800000> : vector<8xf32>
    %18 = vector.multi_reduction <maximumf>, %17, %cst_12 [1] : vector<8x128xf32> to vector<8xf32>
    %19 = vector.shape_cast %18 : vector<8xf32> to vector<8x1xf32>
    %20 = vector.broadcast %19 : vector<8x1xf32> to vector<8x128xf32>
    %21 = arith.subf %17, %20 : vector<8x128xf32>
    %22 = math.exp %21 : vector<8x128xf32>
    %cst_13 = arith.constant dense<0.000000e+00> : vector<8xf32>
    %23 = vector.multi_reduction <add>, %22, %cst_13 [1] : vector<8x128xf32> to vector<8xf32>
    %24 = vector.shape_cast %23 : vector<8xf32> to vector<8x1xf32>
    %cst_14 = arith.constant 1.000000e+00 : f32
    %25 = vector.broadcast %cst_14 : f32 to vector<8x1xf32>
    %26 = arith.divf %25, %24 : vector<8x1xf32>
    %27 = vector.broadcast %26 : vector<8x1xf32> to vector<8x128xf32>
    %28 = arith.mulf %22, %27 : vector<8x128xf32>
    %c0_15 = arith.constant 0 : index
    %c0_16 = arith.constant 0 : index
    %29 = vector.load %arg6[%c0_15, %c0_16] : memref<8x128xf32, #tpu.memory_space<vmem>>, vector<8x128xf32>
    tpu.vector_store %arg6[%c0_15, %c0_16], %28 {strides = array<i32>} : memref<8x128xf32, #tpu.memory_space<vmem>>, vector<8x128xf32>,
    return
  }
  func.func @transform_0(%arg0: i32) -> (i32, i32) {
    %c0_i32 = arith.constant 0 : i32
    %c0_i32_0 = arith.constant 0 : i32
    return %arg0, %c0_i32 : i32, i32
  }
  func.func @transform_1(%arg0: i32) -> (i32, i32) {
    %c0_i32 = arith.constant 0 : i32
    %c0_i32_0 = arith.constant 0 : i32
    %c0_i32_1 = arith.constant 0 : i32
    return %c0_i32, %c0_i32_0 : i32, i32
  }
  func.func @transform_2(%arg0: i32) -> (i32, i32) {
    %c0_i32 = arith.constant 0 : i32
    %c0_i32_0 = arith.constant 0 : i32
    %c0_i32_1 = arith.constant 0 : i32
    return %c0_i32, %c0_i32_0 : i32, i32
  }
  func.func @transform_3(%arg0: i32) -> (i32, i32) {
    %c0_i32 = arith.constant 0 : i32
    %c0_i32_0 = arith.constant 0 : i32
    %c0_i32_1 = arith.constant 0 : i32
    return %c0_i32, %c0_i32_0 : i32, i32
  }
  func.func @transform_4(%arg0: i32) -> (i32, i32) {
    %c0_i32 = arith.constant 0 : i32
    %c0_i32_0 = arith.constant 0 : i32
    %c0_i32_1 = arith.constant 0 : i32
    return %c0_i32, %c0_i32_0 : i32, i32
  }
  func.func @transform_5(%arg0: i32) -> (i32, i32) {
    %c0_i32 = arith.constant 0 : i32
    %c0_i32_0 = arith.constant 0 : i32
    return %arg0, %c0_i32 : i32, i32
  }
}

</mosaic_0001>

<llo_original>
// kernel: tpu_custom_call.1
$region0: #{tpu_custom_call.1}
  #allocation0 [shape = 'u32[]', space=smem, size = 0x4, offset = 0x4, fixed_abs, tag = 'smem constant byte address 0x4 - core index']
  #allocation1 [shape = 'u32[72,128]{1,0:T(1,128)}', space=vmem, size = 0x9000, scoped, tag = 'internal scratch']
  %s0 = inlined_call_operand.hbm [shape: f32[8,128], index: 0, kind: input, shape index: {}]
  %s1 = inlined_call_operand.hbm [shape: f32[128,128], index: 1, kind: input, shape index: {}]
  %s2 = inlined_call_operand.vmem [shape: f32[1,128], index: 2, kind: input, shape index: {}]
  %s3 = inlined_call_operand.hbm [shape: f32[128,128], index: 3, kind: input, shape index: {}]
  %s4 = inlined_call_operand.vmem [shape: f32[1,128], index: 4, kind: input, shape index: {}]
  %s5 = inlined_call_operand.hbm [shape: f32[8,128], index: 5, kind: output, shape index: {}]
  %s6 = sld [smem:[#allocation0]]
  $region42: #{tpu_custom_call.1} parent=0
    _
  %s8 = ssub.s32 1, %s6
  %s9 = scalar_select 0, %s8, %s6
  $region1: #{tpu_custom_call.1} parent=0
    #allocation2 [shape = 'u8[4096]{0}', space=vmem, size = 0x1000, scoped, tag = 'input window, operand 0, single buffered']
    #allocation3 [shape = 's32[1]{0}', space=sflag, size = 0x4, scoped, tag = 'scoped memory for tpu_custom_call.1']
    #allocation4 [shape = 's32[1]{0}', space=sflag, size = 0x4, scoped, tag = 'scoped memory for tpu_custom_call.1']
    #allocation5 [shape = 'u8[65536]{0}', space=vmem, size = 0x10000, scoped, tag = 'input window, operand 1, single buffered']
    #allocation6 [shape = 's32[1]{0}', space=sflag, size = 0x4, scoped, tag = 'scoped memory for tpu_custom_call.1']
    #allocation7 [shape = 'u8[65536]{0}', space=vmem, size = 0x10000, scoped, tag = 'input window, operand 3, single buffered']
    #allocation8 [shape = 'u8[4096]{0}', space=vmem, size = 0x1000, scoped, tag = 'output window, operand 0, single buffered']
    %10 = vsyncpa [#allocation3], 0
    %11 = vsyncpa [#allocation6], 0
    %12 = vsyncpa [#allocation4], 0
    // Predicated region
    $region2: #{tpu_custom_call.1} parent=1 // pred_check
      _
    $region3: #{tpu_custom_call.1} parent=1 // pred_check_branch
      %14 = sbr.rel (0) target = $region5
    $region4: #{tpu_custom_call.1} parent=1 // pred_region
      %16 = vsyncadd [#allocation3], 0
      %s18 = sshll.u32 %s0, 4
      %s19 = int_to_ptr.hbm [resolvable:$true] %s18
      %s20 = sshll.u32 [#allocation2], 4
      %s21 = int_to_ptr.vmem [resolvable:$true] %s20
      %23 = dma.hbm_to_vmem [thread:$0]  %s19, 128, %s21, [#allocation3]
    $region5: #{tpu_custom_call.1} parent=1 // pred_fallthru
      _
    // Predicated region
    $region6: #{tpu_custom_call.1} parent=1 // pred_check
      _
    $region7: #{tpu_custom_call.1} parent=1 // pred_check_branch
      %25 = sbr.rel (0) target = $region9
    $region8: #{tpu_custom_call.1} parent=1 // pred_region
      %27 = vsyncadd [#allocation6], 0
      %s28 = sshll.u32 %s1, 4
      %s29 = int_to_ptr.hbm [resolvable:$true] %s28
      %s30 = sshll.u32 [#allocation5], 4
      %s31 = int_to_ptr.vmem [resolvable:$true] %s30
      %36 = dma.hbm_to_vmem [thread:$0]  %s29, 2048, %s31, [#allocation6], 128, 128, 8
    $region9: #{tpu_custom_call.1} parent=1 // pred_fallthru
      _
    // Predicated region
    $region10: #{tpu_custom_call.1} parent=1 // pred_check
      _
    $region11: #{tpu_custom_call.1} parent=1 // pred_check_branch
      %38 = sbr.rel (0) target = $region13
    $region12: #{tpu_custom_call.1} parent=1 // pred_region
      _
    $region13: #{tpu_custom_call.1} parent=1 // pred_fallthru
      _
    // Predicated region
    $region14: #{tpu_custom_call.1} parent=1 // pred_check
      _
    $region15: #{tpu_custom_call.1} parent=1 // pred_check_branch
      %40 = sbr.rel (0) target = $region17
    $region16: #{tpu_custom_call.1} parent=1 // pred_region
      %42 = vsyncadd [#allocation6], 0
      %s43 = sshll.u32 %s3, 4
      %s44 = int_to_ptr.hbm [resolvable:$true] %s43
      %s45 = sshll.u32 [#allocation7], 4
      %s46 = int_to_ptr.vmem [resolvable:$true] %s45
      %51 = dma.hbm_to_vmem [thread:$0]  %s44, 2048, %s46, [#allocation6], 128, 128, 8
    $region17: #{tpu_custom_call.1} parent=1 // pred_fallthru
      _
    // Predicated region
    $region18: #{tpu_custom_call.1} parent=1 // pred_check
      _
    $region19: #{tpu_custom_call.1} parent=1 // pred_check_branch
      %53 = sbr.rel (0) target = $region21
    $region20: #{tpu_custom_call.1} parent=1 // pred_region
      _
    $region21: #{tpu_custom_call.1} parent=1 // pred_fallthru
      _
    // Predicated region
    $region22: #{tpu_custom_call.1} parent=1 // pred_check
      _
    $region23: #{tpu_custom_call.1} parent=1 // pred_check_branch
      %55 = sbr.rel (0) target = $region25
    $region24: #{tpu_custom_call.1} parent=1 // pred_region
      %57 = dma.done [#allocation3], 128
    $region25: #{tpu_custom_call.1} parent=1 // pred_fallthru
      _
    // Predicated region
    $region26: #{tpu_custom_call.1} parent=1 // pred_check
      _
    $region27: #{tpu_custom_call.1} parent=1 // pred_check_branch
      %59 = sbr.rel (0) target = $region29
    $region28: #{tpu_custom_call.1} parent=1 // pred_region
      %61 = dma.done [#allocation6], 2048
    $region29: #{tpu_custom_call.1} parent=1 // pred_fallthru
      _
    // Predicated region
    $region30: #{tpu_custom_call.1} parent=1 // pred_check
      _
    $region31: #{tpu_custom_call.1} parent=1 // pred_check_branch
      %63 = sbr.rel (0) target = $region33
    $region32: #{tpu_custom_call.1} parent=1 // pred_region
      %65 = dma.done [#allocation6], 2048
    $region33: #{tpu_custom_call.1} parent=1 // pred_fallthru
      _
    %v66 = vld [vmem:[#allocation2] sm:$0xff]
    %v67 = vld [vmem:[#allocation5] sm:$0xff]
    %v68 = vld [vmem:[#allocation5 + $0x8] sm:$0xff]
    %v69 = vld [vmem:[#allocation5 + $0x10] sm:$0xff]
    %v70 = vld [vmem:[#allocation5 + $0x18] sm:$0xff]
    %v71 = vld [vmem:[#allocation5 + $0x20] sm:$0xff]
    %v72 = vld [vmem:[#allocation5 + $0x28] sm:$0xff]
    %v73 = vld [vmem:[#allocation5 + $0x30] sm:$0xff]
    %v74 = vld [vmem:[#allocation5 + $0x38] sm:$0xff]
    %v75 = vld [vmem:[#allocation5 + $0x40] sm:$0xff]
    %v76 = vld [vmem:[#allocation5 + $0x48] sm:$0xff]
    %v77 = vld [vmem:[#allocation5 + $0x50] sm:$0xff]
    %v78 = vld [vmem:[#allocation5 + $0x58] sm:$0xff]
    %v79 = vld [vmem:[#allocation5 + $0x60] sm:$0xff]
    %v80 = vld [vmem:[#allocation5 + $0x68] sm:$0xff]
    %v81 = vld [vmem:[#allocation5 + $0x70] sm:$0xff]
    %v82 = vld [vmem:[#allocation5 + $0x78] sm:$0xff]
    %v83 = vld [vmem:[%s2] sm:$0x1]
    %v85 = vperm.slane %v83, 0
    %87 = vmatpush.msra.mxu0 %v82
    %88 = vmatpush.msra.mxu0 %v81
    %89 = vmatpush.msra.mxu0 %v80
    %90 = vmatpush.msra.mxu0 %v79
    %91 = vmatpush.msra.mxu0 %v78
    %92 = vmatpush.msra.mxu0 %v77
    %93 = vmatpush.msra.mxu0 %v76
    %94 = vmatpush.msra.mxu0 %v75
    %95 = vmatpush.msra.mxu0 %v74
    %96 = vmatpush.msra.mxu0 %v73
    %97 = vmatpush.msra.mxu0 %v72
    %98 = vmatpush.msra.mxu0 %v71
    %99 = vmatpush.msra.mxu0 %v70
    %100 = vmatpush.msra.mxu0 %v69
    %101 = vmatpush.msra.mxu0 %v68
    %102 = vmatpush.msra.mxu0 %v67
    %103 = vmatmul.f32.gmra.mxu0 %v66
    %v104 = vpop.f32.mrf.mxu0
    %v105 = vadd.f32 %v85, %v104
    %106 = vdwg.mxu0
    %v107 = vmax.f32 %v105, 0.0
    %v108 = vld [vmem:[#allocation7] sm:$0xff]
    %v109 = vld [vmem:[#allocation7 + $0x8] sm:$0xff]
    %v110 = vld [vmem:[#allocation7 + $0x10] sm:$0xff]
    %v111 = vld [vmem:[#allocation7 + $0x18] sm:$0xff]
    %v112 = vld [vmem:[#allocation7 + $0x20] sm:$0xff]
    %v113 = vld [vmem:[#allocation7 + $0x28] sm:$0xff]
    %v114 = vld [vmem:[#allocation7 + $0x30] sm:$0xff]
    %v115 = vld [vmem:[#allocation7 + $0x38] sm:$0xff]
    %v116 = vld [vmem:[#allocation7 + $0x40] sm:$0xff]
    %v117 = vld [vmem:[#allocation7 + $0x48] sm:$0xff]
    %v118 = vld [vmem:[#allocation7 + $0x50] sm:$0xff]
    %v119 = vld [vmem:[#allocation7 + $0x58] sm:$0xff]
    %v120 = vld [vmem:[#allocation7 + $0x60] sm:$0xff]
    %v121 = vld [vmem:[#allocation7 + $0x68] sm:$0xff]
    %v122 = vld [vmem:[#allocation7 + $0x70] sm:$0xff]
    %v123 = vld [vmem:[#allocation7 + $0x78] sm:$0xff]
    %v124 = vld [vmem:[%s4] sm:$0x1]
    %v126 = vperm.slane %v124, 0
    %128 = vmatpush.msra.mxu0 %v123
    %129 = vmatpush.msra.mxu0 %v122
    %130 = vmatpush.msra.mxu0 %v121
    %131 = vmatpush.msra.mxu0 %v120
    %132 = vmatpush.msra.mxu0 %v119
    %133 = vmatpush.msra.mxu0 %v118
    %134 = vmatpush.msra.mxu0 %v117
    %135 = vmatpush.msra.mxu0 %v116
    %136 = vmatpush.msra.mxu0 %v115
    %137 = vmatpush.msra.mxu0 %v114
    %138 = vmatpush.msra.mxu0 %v113
    %139 = vmatpush.msra.mxu0 %v112
    %140 = vmatpush.msra.mxu0 %v111
    %141 = vmatpush.msra.mxu0 %v110
    %142 = vmatpush.msra.mxu0 %v109
    %143 = vmatpush.msra.mxu0 %v108
    %144 = vmatmul.f32.gmra.mxu0 %v107
    %v145 = vpop.f32.mrf.mxu0
    %v146 = vadd.f32 %v126, %v145
    %147 = vdwg.mxu0
    %v148 = vlaneseq
    %v149 = vand.u32 %v148, 127
    %vm150 = vcmp.lt.s32.totalorder %v149, 16
    %v151 = vsel %vm150, %v146, -inf
    %152 = vmax.xlane.f32.xlu0 %v151
    %v153 = vpop.xlane.xlu0 %152
    %v154 = vsub.f32 %v151, %v153
    %v155 = vmul.f32 %v154, 1.442695
    %v156 = vpow.pop %v155
    %157 = vadd.xlane.f32.xlu0 %v156
    %v158 = vpop.xlane.xlu0 %157
    %v159 = vrcp.pop %v158
    %v160 = vmul.f32 %v158, %v159
    %v161 = vsub.f32 1.0, %v160
    %v162 = vmul.f32 %v159, %v161
    %v163 = vadd.f32 %v159, %v162
    %vm164 = vweird.f32 %v158
    %vm165 = vweird.f32 %v159
    %vm166 = vmor %vm164, %vm165
    %v167 = vsel %vm166, %v159, %v163
    %v168 = vand.u32 2147483647, %v158
    %vm169 = vcmp.eq.f32.partialorder %v168, 8.507059e+37
    %v170 = vand.u32 %v158, 2147483648
    %v171 = vor.u32 1.1754944e-38, %v170
    %v172 = vsel %vm169, %v171, %v167
    %v173 = vmul.f32 1.0, %v172
    %v174 = vmul.f32 %v156, %v173
    %175 = vst [vmem:[#allocation8] sm:$0xff] %v174
    // Predicated region
    $region34: #{tpu_custom_call.1} parent=1 // pred_check
      _
    $region35: #{tpu_custom_call.1} parent=1 // pred_check_branch
      %177 = sbr.rel (0) target = $region37
    $region36: #{tpu_custom_call.1} parent=1 // pred_region
      %179 = vsyncadd [#allocation4], 0
      %s181 = sshll.u32 [#allocation8], 4
      %s182 = int_to_ptr.vmem [resolvable:$true] %s181
      %s183 = sshll.u32 %s5, 4
      %s184 = int_to_ptr.hbm [resolvable:$true] %s183
      %186 = dma.vmem_to_hbm [thread:$0]  %s182, 128, %s184, [#allocation4]
    $region37: #{tpu_custom_call.1} parent=1 // pred_fallthru
      _
    // Predicated region
    $region38: #{tpu_custom_call.1} parent=1 // pred_check
      _
    $region39: #{tpu_custom_call.1} parent=1 // pred_check_branch
      %188 = sbr.rel (0) target = $region41
    $region40: #{tpu_custom_call.1} parent=1 // pred_region
      %190 = dma.done [#allocation4], 128
    $region41: #{tpu_custom_call.1} parent=1 // pred_fallthru
      _
    %191 = vsyncpa [#allocation3], 1
    %192 = vsyncpa [#allocation6], 1
    %193 = vsyncpa [#allocation4], 1

</llo_original>
